<compile_context>
chip_gen: v7x
topology: tpu7x:2x2x1
jax: 0.10.0
libtpu: 0.0.40
codegen_flags: <defaults>
</compile_context>

<pallas_src>
import functools

import jax
import jax.numpy as jnp
from jax.experimental import pallas as pl
from jax.experimental.pallas import tpu as pltpu

# Deterministic synthetic loss weights (the PyTorch module referenced module-level
# constants; we pin concrete values here).
L1_LOSS_WEIGHT = 1.0
MSE_LOSS_WEIGHT = 1.0
INTER_JOINT_LOSS_WEIGHT = 0.5
ABS_ROOT_LOSS_WEIGHT = 0.25

_LANE = 128
_MAX_TB = 512  # batch-tile width; sized so [J,J,TB] intermediates stay well under
               # the scoped-VMEM default on every generation (v5e/v6e/v7x).


def _sum_leading2(x):
    """Reduce the two leading axes of [A, S, TB] -> [TB] (lanes kept intact)."""
    return jnp.sum(jnp.sum(x, axis=0), axis=0)


def _pose_loss_kernel(pred_ref, gt_ref, out_ref,
                      mse_acc, l1_acc, inter_acc, root_acc, *,
                      J, TB, mse_w, l1_w, inter_w, root_w,
                      inv_n_elem, inv_n_pairs, inv_n_root):
    # pred_ref / gt_ref: [3, J, TB] input tiles in VMEM (batch on lanes)
    # out_ref: [8] f32 in SMEM (0: total, 1: mse, 2: l1, 3: inter_joint, 4: abs_root)
    # *_acc:  (1, TB) f32 lane-wide accumulators, persistent across grid steps.

    @pl.when(pl.program_id(0) == 0)
    def _init():
        mse_acc[...] = jnp.zeros_like(mse_acc)
        l1_acc[...] = jnp.zeros_like(l1_acc)
        inter_acc[...] = jnp.zeros_like(inter_acc)
        root_acc[...] = jnp.zeros_like(root_acc)

    # Upcast after load so bf16 inputs stream at half the HBM bytes but all
    # arithmetic/accumulation stays f32 (also required on v5e: no bf16 VPU).
    p = pred_ref[...].astype(jnp.float32)   # [3, J, TB]
    g = gt_ref[...].astype(jnp.float32)
    d = p - g                               # [3, J, TB]

    # MSE / L1 partial sums (per-lane; cross-lane reduce deferred to finalize).
    mse_acc[...] += _sum_leading2(d * d)[None, :]
    l1_acc[...] += _sum_leading2(jnp.abs(d))[None, :]

    # abs_root_distance_loss: joint index 0 is a direct sublane slice.
    root_acc[...] += jnp.sum(jnp.abs(d[:, 0, :]), axis=0)[None, :]

    # inter_joint_distance_loss: pairwise L2 distances as [J, J, TB].
    def sq_pair_dists(x):  # x: [3, J, TB] -> [J, J, TB] squared distances
        acc = jnp.zeros((J, J, TB), jnp.float32)
        for c in range(3):                  # static unroll over xyz coords
            xc = x[c]                       # [J, TB]
            diff = xc[:, None, :] - xc[None, :, :]   # [J, J, TB]
            acc = acc + diff * diff
        return acc

    pred_d = jnp.sqrt(sq_pair_dists(p))
    gt_d = jnp.sqrt(sq_pair_dists(g))
    # Symmetric matrix with exactly-zero diagonal: triu(k=1) sum == 0.5 * full sum.
    inter_acc[...] += (0.5 * _sum_leading2(jnp.abs(pred_d - gt_d)))[None, :]

    @pl.when(pl.program_id(0) == pl.num_programs(0) - 1)
    def _finalize():
        mse = jnp.sum(mse_acc[...]) * inv_n_elem
        l1 = jnp.sum(l1_acc[...]) * inv_n_elem
        inter = jnp.sum(inter_acc[...]) * inv_n_pairs
        root = jnp.sum(root_acc[...]) * inv_n_root
        total = mse_w * mse + l1_w * l1 + inter_w * inter + root_w * root
        out_ref[0] = total
        out_ref[1] = mse
        out_ref[2] = l1
        out_ref[3] = inter
        out_ref[4] = root
        out_ref[5] = jnp.float32(0.0)
        out_ref[6] = jnp.float32(0.0)
        out_ref[7] = jnp.float32(0.0)


def comprehensive_pose_loss(pred_joints, gt_joints,
                            l1_weight=L1_LOSS_WEIGHT,
                            mse_weight=MSE_LOSS_WEIGHT,
                            inter_joint_loss_weight=INTER_JOINT_LOSS_WEIGHT,
                            abs_root_loss_weight=ABS_ROOT_LOSS_WEIGHT):
    """pred_joints, gt_joints: [B, J, 3] -> (total_loss, loss_components)."""
    B, J, C = pred_joints.shape
    assert C == 3, "joints must be 3D"

    # Glue: coordinate-major, batch-on-lanes layout [3, J, B]. Keep input dtype
    # (bf16 stays bf16 through the DMA; upcast happens inside the kernel).
    pred_t = jnp.transpose(pred_joints, (2, 1, 0))
    gt_t = jnp.transpose(gt_joints, (2, 1, 0))

    # Pad batch to a multiple of the tile width. Zero padding is exactly neutral:
    # pred_pad == gt_pad == 0 contributes 0 to every loss term, and denominators
    # below use the original B.
    b_lane = ((B + _LANE - 1) // _LANE) * _LANE
    TB = min(_MAX_TB, b_lane)
    B_pad = ((B + TB - 1) // TB) * TB
    if B_pad != B:
        pad = ((0, 0), (0, 0), (0, B_pad - B))
        pred_t = jnp.pad(pred_t, pad)
        gt_t = jnp.pad(gt_t, pad)

    n_elem = 3.0 * B * J
    n_pairs = float(B * (J * (J - 1) // 2))
    n_root = 3.0 * B

    kernel = functools.partial(
        _pose_loss_kernel, J=J, TB=TB,
        mse_w=float(mse_weight), l1_w=float(l1_weight),
        inter_w=float(inter_joint_loss_weight), root_w=float(abs_root_loss_weight),
        inv_n_elem=1.0 / n_elem, inv_n_pairs=1.0 / n_pairs, inv_n_root=1.0 / n_root)

    grid = (B_pad // TB,)
    out = pl.pallas_call(
        kernel,
        out_shape=jax.ShapeDtypeStruct((8,), jnp.float32),
        grid_spec=pltpu.PrefetchScalarGridSpec(
            num_scalar_prefetch=0,
            grid=grid,
            in_specs=[pl.BlockSpec((3, J, TB), lambda i: (0, 0, i)),
                      pl.BlockSpec((3, J, TB), lambda i: (0, 0, i))],
            out_specs=pl.BlockSpec(memory_space=pltpu.MemorySpace.SMEM),
            scratch_shapes=[pltpu.VMEM((1, TB), jnp.float32)] * 4),
        compiler_params=pltpu.CompilerParams(
            dimension_semantics=("arbitrary",),   # reduction axis (shared accumulators)
            vmem_limit_bytes=32 * 1024 * 1024),
        # TODO(synk): on v7x the batch axis could additionally be split across the
        # 2 TensorCores with per-core partial outputs summed in the wrapper.
    )(pred_t, gt_t)

    total_loss = out[0]
    loss_components = {
        'mse_loss': out[1],
        'l1_loss': out[2],
        'inter_joint_loss': out[3],
        'abs_root_loss': out[4],
        'total_loss': total_loss,
    }
    return total_loss, loss_components


def _reference_total(pred, gt):
    d = pred - gt
    mse = jnp.mean(d * d)
    l1 = jnp.mean(jnp.abs(d))
    pd = jnp.linalg.norm(pred[:, :, None, :] - pred[:, None, :, :], axis=-1)
    gd = jnp.linalg.norm(gt[:, :, None, :] - gt[:, None, :, :], axis=-1)
    J = pred.shape[1]
    iu_i, iu_j = jnp.triu_indices(J, k=1)
    inter = jnp.mean(jnp.abs(pd[:, iu_i, iu_j] - gd[:, iu_i, iu_j]))
    root = jnp.mean(jnp.abs(pred[:, 0, :] - gt[:, 0, :]))
    return (MSE_LOSS_WEIGHT * mse + L1_LOSS_WEIGHT * l1
            + INTER_JOINT_LOSS_WEIGHT * inter + ABS_ROOT_LOSS_WEIGHT * root)


if __name__ == "__main__":
    key = jax.random.PRNGKey(0)
    k1, k2 = jax.random.split(key)
    B, J = 2, 8
    pred = jax.random.normal(k1, (B, J, 3), dtype=jnp.float32)
    gt = jax.random.normal(k2, (B, J, 3), dtype=jnp.float32)

    total, comps = comprehensive_pose_loss(pred, gt)
    jax.block_until_ready(total)

    ref = _reference_total(pred, gt)
    assert abs(float(total) - float(ref)) < 1e-4, (float(total), float(ref))
    print("KERNEL_OK")
</pallas_src>

<mosaic_0001>
module attributes {stable_mosaic.version = 11 : i64} {
  func.func @_pose_loss_kernel(%arg0: i32, %arg1: memref<3x8x128xf32, #tpu.memory_space<vmem>>, %arg2: memref<3x8x128xf32, #tpu.memory_space<vmem>>, %arg3: memref<8xf32, #tpu.memory_space<smem>>, %arg4: memref<1x128xf32, #tpu.memory_space<vmem>>, %arg5: memref<1x128xf32, #tpu.memory_space<vmem>>, %arg6: memref<1x128xf32, #tpu.memory_space<vmem>>, %arg7: memref<1x128xf32, #tpu.memory_space<vmem>>) attributes {dimension_semantics = [#tpu.dimension_semantics<arbitrary>], iteration_bounds = array<i64: 1>, scalar_prefetch = 0 : i64, scratch_operands = 4 : i64, tpu.core_type = #tpu.core_type<tc>, window_params = [{transform_indices = @transform_0, window_bounds = array<i64: 3, 8, 128>}, {transform_indices = @transform_1, window_bounds = array<i64: 3, 8, 128>}, {transform_indices = @transform_2, window_bounds = array<i64: 8>}]} {
    %c0_i32 = arith.constant 0 : i32
    %0 = arith.cmpi eq, %arg0, %c0_i32 : i32
    %1 = arith.extui %0 : i1 to i32
    %c0_i32_0 = arith.constant 0 : i32
    %2 = arith.cmpi ne, %1, %c0_i32_0 : i32
    scf.if %2 {
      %cst_33 = arith.constant 0.000000e+00 : f32
      %99 = vector.broadcast %cst_33 : f32 to vector<1x128xf32>
      %c0_34 = arith.constant 0 : index
      %c0_35 = arith.constant 0 : index
      %100 = vector.load %arg4[%c0_34, %c0_35] : memref<1x128xf32, #tpu.memory_space<vmem>>, vector<1x128xf32>
      tpu.vector_store %arg4[%c0_34, %c0_35], %99 {strides = array<i32>} : memref<1x128xf32, #tpu.memory_space<vmem>>, vector<1x128xf32>,
      %cst_36 = arith.constant 0.000000e+00 : f32
      %101 = vector.broadcast %cst_36 : f32 to vector<1x128xf32>
      %c0_37 = arith.constant 0 : index
      %c0_38 = arith.constant 0 : index
      %102 = vector.load %arg5[%c0_37, %c0_38] : memref<1x128xf32, #tpu.memory_space<vmem>>, vector<1x128xf32>
      tpu.vector_store %arg5[%c0_37, %c0_38], %101 {strides = array<i32>} : memref<1x128xf32, #tpu.memory_space<vmem>>, vector<1x128xf32>,
      %cst_39 = arith.constant 0.000000e+00 : f32
      %103 = vector.broadcast %cst_39 : f32 to vector<1x128xf32>
      %c0_40 = arith.constant 0 : index
      %c0_41 = arith.constant 0 : index
      %104 = vector.load %arg6[%c0_40, %c0_41] : memref<1x128xf32, #tpu.memory_space<vmem>>, vector<1x128xf32>
      tpu.vector_store %arg6[%c0_40, %c0_41], %103 {strides = array<i32>} : memref<1x128xf32, #tpu.memory_space<vmem>>, vector<1x128xf32>,
      %cst_42 = arith.constant 0.000000e+00 : f32
      %105 = vector.broadcast %cst_42 : f32 to vector<1x128xf32>
      %c0_43 = arith.constant 0 : index
      %c0_44 = arith.constant 0 : index
      %106 = vector.load %arg7[%c0_43, %c0_44] : memref<1x128xf32, #tpu.memory_space<vmem>>, vector<1x128xf32>
      tpu.vector_store %arg7[%c0_43, %c0_44], %105 {strides = array<i32>} : memref<1x128xf32, #tpu.memory_space<vmem>>, vector<1x128xf32>,
    } else {
    }
    %c0 = arith.constant 0 : index
    %c0_1 = arith.constant 0 : index
    %c0_2 = arith.constant 0 : index
    %3 = vector.load %arg1[%c0, %c0_1, %c0_2] : memref<3x8x128xf32, #tpu.memory_space<vmem>>, vector<3x8x128xf32>
    %c0_3 = arith.constant 0 : index
    %c0_4 = arith.constant 0 : index
    %c0_5 = arith.constant 0 : index
    %4 = vector.load %arg2[%c0_3, %c0_4, %c0_5] : memref<3x8x128xf32, #tpu.memory_space<vmem>>, vector<3x8x128xf32>
    %5 = arith.subf %3, %4 : vector<3x8x128xf32>
    %c0_6 = arith.constant 0 : index
    %c0_7 = arith.constant 0 : index
    %6 = vector.load %arg4[%c0_6, %c0_7] : memref<1x128xf32, #tpu.memory_space<vmem>>, vector<1x128xf32>
    %7 = arith.mulf %5, %5 : vector<3x8x128xf32>
    %cst = arith.constant dense<0.000000e+00> : vector<8x128xf32>
    %8 = vector.multi_reduction <add>, %7, %cst [0] : vector<3x8x128xf32> to vector<8x128xf32>
    %cst_8 = arith.constant dense<0.000000e+00> : vector<128xf32>
    %9 = vector.multi_reduction <add>, %8, %cst_8 [0] : vector<8x128xf32> to vector<128xf32>
    %10 = vector.shape_cast %9 : vector<128xf32> to vector<1x128xf32>
    %11 = arith.addf %6, %10 : vector<1x128xf32>
    %c0_9 = arith.constant 0 : index
    %c0_10 = arith.constant 0 : index
    %12 = vector.load %arg4[%c0_9, %c0_10] : memref<1x128xf32, #tpu.memory_space<vmem>>, vector<1x128xf32>
    tpu.vector_store %arg4[%c0_9, %c0_10], %11 {strides = array<i32>} : memref<1x128xf32, #tpu.memory_space<vmem>>, vector<1x128xf32>,
    %c0_11 = arith.constant 0 : index
    %c0_12 = arith.constant 0 : index
    %13 = vector.load %arg5[%c0_11, %c0_12] : memref<1x128xf32, #tpu.memory_space<vmem>>, vector<1x128xf32>
    %14 = math.absf %5 : vector<3x8x128xf32>
    %cst_13 = arith.constant dense<0.000000e+00> : vector<8x128xf32>
    %15 = vector.multi_reduction <add>, %14, %cst_13 [0] : vector<3x8x128xf32> to vector<8x128xf32>
    %cst_14 = arith.constant dense<0.000000e+00> : vector<128xf32>
    %16 = vector.multi_reduction <add>, %15, %cst_14 [0] : vector<8x128xf32> to vector<128xf32>
    %17 = vector.shape_cast %16 : vector<128xf32> to vector<1x128xf32>
    %18 = arith.addf %13, %17 : vector<1x128xf32>
    %c0_15 = arith.constant 0 : index
    %c0_16 = arith.constant 0 : index
    %19 = vector.load %arg5[%c0_15, %c0_16] : memref<1x128xf32, #tpu.memory_space<vmem>>, vector<1x128xf32>
    tpu.vector_store %arg5[%c0_15, %c0_16], %18 {strides = array<i32>} : memref<1x128xf32, #tpu.memory_space<vmem>>, vector<1x128xf32>,
    %c0_17 = arith.constant 0 : index
    %c0_18 = arith.constant 0 : index
    %20 = vector.load %arg7[%c0_17, %c0_18] : memref<1x128xf32, #tpu.memory_space<vmem>>, vector<1x128xf32>
    %21 = vector.extract_strided_slice %5 {offsets = [0, 0, 0], sizes = [3, 1, 128], strides = [1, 1, 1]} : vector<3x8x128xf32> to vector<3x1x128xf32>
    %22 = vector.shape_cast %21 : vector<3x1x128xf32> to vector<3x128xf32>
    %23 = math.absf %22 : vector<3x128xf32>
    %cst_19 = arith.constant dense<0.000000e+00> : vector<128xf32>
    %24 = vector.multi_reduction <add>, %23, %cst_19 [0] : vector<3x128xf32> to vector<128xf32>
    %25 = vector.shape_cast %24 : vector<128xf32> to vector<1x128xf32>
    %26 = arith.addf %20, %25 : vector<1x128xf32>
    %c0_20 = arith.constant 0 : index
    %c0_21 = arith.constant 0 : index
    %27 = vector.load %arg7[%c0_20, %c0_21] : memref<1x128xf32, #tpu.memory_space<vmem>>, vector<1x128xf32>
    tpu.vector_store %arg7[%c0_20, %c0_21], %26 {strides = array<i32>} : memref<1x128xf32, #tpu.memory_space<vmem>>, vector<1x128xf32>,
    %cst_22 = arith.constant 0.000000e+00 : f32
    %28 = vector.broadcast %cst_22 : f32 to vector<8x8x128xf32>
    %29 = vector.extract_strided_slice %3 {offsets = [0, 0, 0], sizes = [1, 8, 128], strides = [1, 1, 1]} : vector<3x8x128xf32> to vector<1x8x128xf32>
    %30 = vector.shape_cast %29 : vector<1x8x128xf32> to vector<8x128xf32>
    %31 = vector.shape_cast %30 : vector<8x128xf32> to vector<8x1x128xf32>
    %32 = vector.shape_cast %30 : vector<8x128xf32> to vector<1x8x128xf32>
    %33 = vector.broadcast %31 : vector<8x1x128xf32> to vector<8x8x128xf32>
    %34 = vector.broadcast %32 : vector<1x8x128xf32> to vector<8x8x128xf32>
    %35 = arith.subf %33, %34 : vector<8x8x128xf32>
    %36 = arith.mulf %35, %35 : vector<8x8x128xf32>
    %37 = arith.addf %28, %36 : vector<8x8x128xf32>
    %38 = vector.extract_strided_slice %3 {offsets = [1, 0, 0], sizes = [1, 8, 128], strides = [1, 1, 1]} : vector<3x8x128xf32> to vector<1x8x128xf32>
    %39 = vector.shape_cast %38 : vector<1x8x128xf32> to vector<8x128xf32>
    %40 = vector.shape_cast %39 : vector<8x128xf32> to vector<8x1x128xf32>
    %41 = vector.shape_cast %39 : vector<8x128xf32> to vector<1x8x128xf32>
    %42 = vector.broadcast %40 : vector<8x1x128xf32> to vector<8x8x128xf32>
    %43 = vector.broadcast %41 : vector<1x8x128xf32> to vector<8x8x128xf32>
    %44 = arith.subf %42, %43 : vector<8x8x128xf32>
    %45 = arith.mulf %44, %44 : vector<8x8x128xf32>
    %46 = arith.addf %37, %45 : vector<8x8x128xf32>
    %47 = vector.extract_strided_slice %3 {offsets = [2, 0, 0], sizes = [1, 8, 128], strides = [1, 1, 1]} : vector<3x8x128xf32> to vector<1x8x128xf32>
    %48 = vector.shape_cast %47 : vector<1x8x128xf32> to vector<8x128xf32>
    %49 = vector.shape_cast %48 : vector<8x128xf32> to vector<8x1x128xf32>
    %50 = vector.shape_cast %48 : vector<8x128xf32> to vector<1x8x128xf32>
    %51 = vector.broadcast %49 : vector<8x1x128xf32> to vector<8x8x128xf32>
    %52 = vector.broadcast %50 : vector<1x8x128xf32> to vector<8x8x128xf32>
    %53 = arith.subf %51, %52 : vector<8x8x128xf32>
    %54 = arith.mulf %53, %53 : vector<8x8x128xf32>
    %55 = arith.addf %46, %54 : vector<8x8x128xf32>
    %56 = math.sqrt %55 : vector<8x8x128xf32>
    %cst_23 = arith.constant 0.000000e+00 : f32
    %57 = vector.broadcast %cst_23 : f32 to vector<8x8x128xf32>
    %58 = vector.extract_strided_slice %4 {offsets = [0, 0, 0], sizes = [1, 8, 128], strides = [1, 1, 1]} : vector<3x8x128xf32> to vector<1x8x128xf32>
    %59 = vector.shape_cast %58 : vector<1x8x128xf32> to vector<8x128xf32>
    %60 = vector.shape_cast %59 : vector<8x128xf32> to vector<8x1x128xf32>
    %61 = vector.shape_cast %59 : vector<8x128xf32> to vector<1x8x128xf32>
    %62 = vector.broadcast %60 : vector<8x1x128xf32> to vector<8x8x128xf32>
    %63 = vector.broadcast %61 : vector<1x8x128xf32> to vector<8x8x128xf32>
    %64 = arith.subf %62, %63 : vector<8x8x128xf32>
    %65 = arith.mulf %64, %64 : vector<8x8x128xf32>
    %66 = arith.addf %57, %65 : vector<8x8x128xf32>
    %67 = vector.extract_strided_slice %4 {offsets = [1, 0, 0], sizes = [1, 8, 128], strides = [1, 1, 1]} : vector<3x8x128xf32> to vector<1x8x128xf32>
    %68 = vector.shape_cast %67 : vector<1x8x128xf32> to vector<8x128xf32>
    %69 = vector.shape_cast %68 : vector<8x128xf32> to vector<8x1x128xf32>
    %70 = vector.shape_cast %68 : vector<8x128xf32> to vector<1x8x128xf32>
    %71 = vector.broadcast %69 : vector<8x1x128xf32> to vector<8x8x128xf32>
    %72 = vector.broadcast %70 : vector<1x8x128xf32> to vector<8x8x128xf32>
    %73 = arith.subf %71, %72 : vector<8x8x128xf32>
    %74 = arith.mulf %73, %73 : vector<8x8x128xf32>
    %75 = arith.addf %66, %74 : vector<8x8x128xf32>
    %76 = vector.extract_strided_slice %4 {offsets = [2, 0, 0], sizes = [1, 8, 128], strides = [1, 1, 1]} : vector<3x8x128xf32> to vector<1x8x128xf32>
    %77 = vector.shape_cast %76 : vector<1x8x128xf32> to vector<8x128xf32>
    %78 = vector.shape_cast %77 : vector<8x128xf32> to vector<8x1x128xf32>
    %79 = vector.shape_cast %77 : vector<8x128xf32> to vector<1x8x128xf32>
    %80 = vector.broadcast %78 : vector<8x1x128xf32> to vector<8x8x128xf32>
    %81 = vector.broadcast %79 : vector<1x8x128xf32> to vector<8x8x128xf32>
    %82 = arith.subf %80, %81 : vector<8x8x128xf32>
    %83 = arith.mulf %82, %82 : vector<8x8x128xf32>
    %84 = arith.addf %75, %83 : vector<8x8x128xf32>
    %85 = math.sqrt %84 : vector<8x8x128xf32>
    %c0_24 = arith.constant 0 : index
    %c0_25 = arith.constant 0 : index
    %86 = vector.load %arg6[%c0_24, %c0_25] : memref<1x128xf32, #tpu.memory_space<vmem>>, vector<1x128xf32>
    %87 = arith.subf %56, %85 : vector<8x8x128xf32>
    %88 = math.absf %87 : vector<8x8x128xf32>
    %cst_26 = arith.constant dense<0.000000e+00> : vector<8x128xf32>
    %89 = vector.multi_reduction <add>, %88, %cst_26 [0] : vector<8x8x128xf32> to vector<8x128xf32>
    %cst_27 = arith.constant dense<0.000000e+00> : vector<128xf32>
    %90 = vector.multi_reduction <add>, %89, %cst_27 [0] : vector<8x128xf32> to vector<128xf32>
    %cst_28 = arith.constant 5.000000e-01 : f32
    %91 = vector.broadcast %cst_28 : f32 to vector<128xf32>
    %92 = arith.mulf %91, %90 : vector<128xf32>
    %93 = vector.shape_cast %92 : vector<128xf32> to vector<1x128xf32>
    %94 = arith.addf %86, %93 : vector<1x128xf32>
    %c0_29 = arith.constant 0 : index
    %c0_30 = arith.constant 0 : index
    %95 = vector.load %arg6[%c0_29, %c0_30] : memref<1x128xf32, #tpu.memory_space<vmem>>, vector<1x128xf32>
    tpu.vector_store %arg6[%c0_29, %c0_30], %94 {strides = array<i32>} : memref<1x128xf32, #tpu.memory_space<vmem>>, vector<1x128xf32>,
    %c0_i32_31 = arith.constant 0 : i32
    %96 = arith.cmpi eq, %arg0, %c0_i32_31 : i32
    %97 = arith.extui %96 : i1 to i32
    %c0_i32_32 = arith.constant 0 : i32
    %98 = arith.cmpi ne, %97, %c0_i32_32 : i32
    scf.if %98 {
      %c0_33 = arith.constant 0 : index
      %c0_34 = arith.constant 0 : index
      %99 = vector.load %arg4[%c0_33, %c0_34] : memref<1x128xf32, #tpu.memory_space<vmem>>, vector<1x128xf32>
      %100 = vector.shape_cast %99 : vector<1x128xf32> to vector<1x1x128xf32>
      %cst_35 = arith.constant dense<0.000000e+00> : vector<1xf32>
      %101 = vector.multi_reduction <add>, %100, %cst_35 [1, 2] : vector<1x1x128xf32> to vector<1xf32>
      %102 = vector.shape_cast %101 : vector<1xf32> to vector<1x1x1xf32>
      %103 = vector.extract %102[0, 0, 0] : f32 from vector<1x1x1xf32>
      %cst_36 = arith.constant 0.020833334 : f32
      %104 = arith.mulf %103, %cst_36 : f32
      %c0_37 = arith.constant 0 : index
      %c0_38 = arith.constant 0 : index
      %105 = vector.load %arg5[%c0_37, %c0_38] : memref<1x128xf32, #tpu.memory_space<vmem>>, vector<1x128xf32>
      %106 = vector.shape_cast %105 : vector<1x128xf32> to vector<1x1x128xf32>
      %cst_39 = arith.constant dense<0.000000e+00> : vector<1xf32>
      %107 = vector.multi_reduction <add>, %106, %cst_39 [1, 2] : vector<1x1x128xf32> to vector<1xf32>
      %108 = vector.shape_cast %107 : vector<1xf32> to vector<1x1x1xf32>
      %109 = vector.extract %108[0, 0, 0] : f32 from vector<1x1x1xf32>
      %cst_40 = arith.constant 0.020833334 : f32
      %110 = arith.mulf %109, %cst_40 : f32
      %c0_41 = arith.constant 0 : index
      %c0_42 = arith.constant 0 : index
      %111 = vector.load %arg6[%c0_41, %c0_42] : memref<1x128xf32, #tpu.memory_space<vmem>>, vector<1x128xf32>
      %112 = vector.shape_cast %111 : vector<1x128xf32> to vector<1x1x128xf32>
      %cst_43 = arith.constant dense<0.000000e+00> : vector<1xf32>
      %113 = vector.multi_reduction <add>, %112, %cst_43 [1, 2] : vector<1x1x128xf32> to vector<1xf32>
      %114 = vector.shape_cast %113 : vector<1xf32> to vector<1x1x1xf32>
      %115 = vector.extract %114[0, 0, 0] : f32 from vector<1x1x1xf32>
      %cst_44 = arith.constant 0.0178571437 : f32
      %116 = arith.mulf %115, %cst_44 : f32
      %c0_45 = arith.constant 0 : index
      %c0_46 = arith.constant 0 : index
      %117 = vector.load %arg7[%c0_45, %c0_46] : memref<1x128xf32, #tpu.memory_space<vmem>>, vector<1x128xf32>
      %118 = vector.shape_cast %117 : vector<1x128xf32> to vector<1x1x128xf32>
      %cst_47 = arith.constant dense<0.000000e+00> : vector<1xf32>
      %119 = vector.multi_reduction <add>, %118, %cst_47 [1, 2] : vector<1x1x128xf32> to vector<1xf32>
      %120 = vector.shape_cast %119 : vector<1xf32> to vector<1x1x1xf32>
      %121 = vector.extract %120[0, 0, 0] : f32 from vector<1x1x1xf32>
      %cst_48 = arith.constant 0.166666672 : f32
      %122 = arith.mulf %121, %cst_48 : f32
      %cst_49 = arith.constant 1.000000e+00 : f32
      %123 = arith.mulf %cst_49, %104 : f32
      %cst_50 = arith.constant 1.000000e+00 : f32
      %124 = arith.mulf %cst_50, %110 : f32
      %125 = arith.addf %123, %124 : f32
      %cst_51 = arith.constant 5.000000e-01 : f32
      %126 = arith.mulf %cst_51, %116 : f32
      %127 = arith.addf %125, %126 : f32
      %cst_52 = arith.constant 2.500000e-01 : f32
      %128 = arith.mulf %cst_52, %122 : f32
      %129 = arith.addf %127, %128 : f32
      %c0_53 = arith.constant 0 : index
      %130 = memref.load %arg3[%c0_53] : memref<8xf32, #tpu.memory_space<smem>>
      memref.store %129, %arg3[%c0_53] : memref<8xf32, #tpu.memory_space<smem>>
      %c1 = arith.constant 1 : index
      %131 = memref.load %arg3[%c1] : memref<8xf32, #tpu.memory_space<smem>>
      memref.store %104, %arg3[%c1] : memref<8xf32, #tpu.memory_space<smem>>
      %c2 = arith.constant 2 : index
      %132 = memref.load %arg3[%c2] : memref<8xf32, #tpu.memory_space<smem>>
      memref.store %110, %arg3[%c2] : memref<8xf32, #tpu.memory_space<smem>>
      %c3 = arith.constant 3 : index
      %133 = memref.load %arg3[%c3] : memref<8xf32, #tpu.memory_space<smem>>
      memref.store %116, %arg3[%c3] : memref<8xf32, #tpu.memory_space<smem>>
      %c4 = arith.constant 4 : index
      %134 = memref.load %arg3[%c4] : memref<8xf32, #tpu.memory_space<smem>>
      memref.store %122, %arg3[%c4] : memref<8xf32, #tpu.memory_space<smem>>
      %cst_54 = arith.constant 0.000000e+00 : f32
      %c5 = arith.constant 5 : index
      %135 = memref.load %arg3[%c5] : memref<8xf32, #tpu.memory_space<smem>>
      memref.store %cst_54, %arg3[%c5] : memref<8xf32, #tpu.memory_space<smem>>
      %cst_55 = arith.constant 0.000000e+00 : f32
      %c6 = arith.constant 6 : index
      %136 = memref.load %arg3[%c6] : memref<8xf32, #tpu.memory_space<smem>>
      memref.store %cst_55, %arg3[%c6] : memref<8xf32, #tpu.memory_space<smem>>
      %cst_56 = arith.constant 0.000000e+00 : f32
      %c7 = arith.constant 7 : index
      %137 = memref.load %arg3[%c7] : memref<8xf32, #tpu.memory_space<smem>>
      memref.store %cst_56, %arg3[%c7] : memref<8xf32, #tpu.memory_space<smem>>
    } else {
    }
    return
  }
  func.func @transform_0(%arg0: i32) -> (i32, i32, i32) {
    %c0_i32 = arith.constant 0 : i32
    %c0_i32_0 = arith.constant 0 : i32
    %c0_i32_1 = arith.constant 0 : i32
    return %c0_i32, %c0_i32_0, %arg0 : i32, i32, i32
  }
  func.func @transform_1(%arg0: i32) -> (i32, i32, i32) {
    %c0_i32 = arith.constant 0 : i32
    %c0_i32_0 = arith.constant 0 : i32
    %c0_i32_1 = arith.constant 0 : i32
    return %c0_i32, %c0_i32_0, %arg0 : i32, i32, i32
  }
  func.func @transform_2(%arg0: i32) -> i32 {
    %c0_i32 = arith.constant 0 : i32
    %c0_i32_0 = arith.constant 0 : i32
    return %c0_i32 : i32
  }
}

</mosaic_0001>

<llo_original>
// kernel: tpu_custom_call.1
$region0: #{tpu_custom_call.1}
  #allocation0 [shape = 'u32[]', space=smem, size = 0x4, offset = 0x4, fixed_abs, tag = 'smem constant byte address 0x4 - core index']
  #allocation1 [shape = 'u32[144,128]{1,0:T(1,128)}', space=vmem, size = 0x12000, scoped, tag = 'internal scratch']
  #allocation2 [shape = 'f32[1,128]{1,0:T(1,128)}', space=vmem, size = 0x200, scoped, tag = 'scratch operand']
  #allocation3 [shape = 'f32[1,128]{1,0:T(1,128)}', space=vmem, size = 0x200, scoped, tag = 'scratch operand']
  #allocation4 [shape = 'f32[1,128]{1,0:T(1,128)}', space=vmem, size = 0x200, scoped, tag = 'scratch operand']
  #allocation5 [shape = 'f32[1,128]{1,0:T(1,128)}', space=vmem, size = 0x200, scoped, tag = 'scratch operand']
  %s0 = inlined_call_operand.hbm [shape: f32[3,8,128], index: 0, kind: input, shape index: {}]
  %s1 = inlined_call_operand.hbm [shape: f32[3,8,128], index: 1, kind: input, shape index: {}]
  %s2 = inlined_call_operand.hbm [shape: f32[8], index: 2, kind: output, shape index: {}]
  %s3 = sld [smem:[#allocation0]]
  $region34: #{tpu_custom_call.1} parent=0
    _
  %s5 = ssub.s32 1, %s3
  %s6 = scalar_select 0, %s5, %s3
  $region1: #{tpu_custom_call.1} parent=0
    #allocation6 [shape = 'u8[12288]{0}', space=vmem, size = 0x3000, scoped, tag = 'input window, operand 0, single buffered']
    #allocation7 [shape = 's32[1]{0}', space=sflag, size = 0x4, scoped, tag = 'scoped memory for tpu_custom_call.1']
    #allocation8 [shape = 's32[1]{0}', space=sflag, size = 0x4, scoped, tag = 'scoped memory for tpu_custom_call.1']
    #allocation9 [shape = 'u8[12288]{0}', space=vmem, size = 0x3000, scoped, tag = 'input window, operand 1, single buffered']
    #allocation10 [shape = 's32[1]{0}', space=sflag, size = 0x4, scoped, tag = 'scoped memory for tpu_custom_call.1']
    #allocation11 [shape = 'u8[512]{0}', space=smem, size = 0x200, scoped, tag = 'output window, operand 0, single buffered']
    %7 = vsyncpa [#allocation7], 0
    %8 = vsyncpa [#allocation10], 0
    %9 = vsyncpa [#allocation8], 0
    // Predicated region
    $region2: #{tpu_custom_call.1} parent=1 // pred_check
      _
    $region3: #{tpu_custom_call.1} parent=1 // pred_check_branch
      %11 = sbr.rel (0) target = $region5
    $region4: #{tpu_custom_call.1} parent=1 // pred_region
      %s13 = ssub.s32 384, 384
      %14 = vsyncadd [#allocation7], %s13
      %s15 = sshll.u32 [#allocation6], 4
      %s16 = int_to_ptr.vmem [resolvable:$true] %s15
      %21 = dma.hbm_to_vmem [thread:$0]  %s0, 384, %s16, [#allocation7], 128, 128, 8
    $region5: #{tpu_custom_call.1} parent=1 // pred_fallthru
      _
    // Predicated region
    $region6: #{tpu_custom_call.1} parent=1 // pred_check
      _
    $region7: #{tpu_custom_call.1} parent=1 // pred_check_branch
      %23 = sbr.rel (0) target = $region9
    $region8: #{tpu_custom_call.1} parent=1 // pred_region
      %s25 = ssub.s32 384, 384
      %26 = vsyncadd [#allocation10], %s25
      %s27 = sshll.u32 [#allocation9], 4
      %s28 = int_to_ptr.vmem [resolvable:$true] %s27
      %33 = dma.hbm_to_vmem [thread:$0]  %s1, 384, %s28, [#allocation10], 128, 128, 8
    $region9: #{tpu_custom_call.1} parent=1 // pred_fallthru
      _
    // Predicated region
    $region10: #{tpu_custom_call.1} parent=1 // pred_check
      _
    $region11: #{tpu_custom_call.1} parent=1 // pred_check_branch
      %35 = sbr.rel (0) target = $region13
    $region12: #{tpu_custom_call.1} parent=1 // pred_region
      %36 = dma.done [#allocation7], 384
    $region13: #{tpu_custom_call.1} parent=1 // pred_fallthru
      _
    // Predicated region
    $region14: #{tpu_custom_call.1} parent=1 // pred_check
      _
    $region15: #{tpu_custom_call.1} parent=1 // pred_check_branch
      %38 = sbr.rel (0) target = $region17
    $region16: #{tpu_custom_call.1} parent=1 // pred_region
      %39 = dma.done [#allocation10], 384
    $region17: #{tpu_custom_call.1} parent=1 // pred_fallthru
      _
    %p40 = scmp.eq.s32.totalorder 0, 0
    // Predicated region
    $region18: #{tpu_custom_call.1} parent=1 // pred_check
      %p41 = pneg %p40
    $region19: #{tpu_custom_call.1} parent=1 // pred_check_branch
      %43 = sbr.rel (%p41) target = $region21
    $region20: #{tpu_custom_call.1} parent=1 // pred_region
      %44 = vst [vmem:[#allocation2] sm:$0x1] 0.0
      %45 = vst [vmem:[#allocation3] sm:$0x1] 0.0
      %46 = vst [vmem:[#allocation4] sm:$0x1] 0.0
      %47 = vst [vmem:[#allocation5] sm:$0x1] 0.0
    $region21: #{tpu_custom_call.1} parent=1 // pred_fallthru
      _
    %v48 = vld [vmem:[#allocation6] sm:$0xff]
    %v49 = vld [vmem:[#allocation6 + $0x8] sm:$0xff]
    %v50 = vld [vmem:[#allocation6 + $0x10] sm:$0xff]
    %v51 = vld [vmem:[#allocation9] sm:$0xff]
    %v52 = vld [vmem:[#allocation9 + $0x8] sm:$0xff]
    %v53 = vld [vmem:[#allocation9 + $0x10] sm:$0xff]
    %v54 = vsub.f32 %v48, %v51
    %v55 = vsub.f32 %v49, %v52
    %v56 = vsub.f32 %v50, %v53
    %v57 = vld [vmem:[#allocation2] sm:$0x1]
    %v58 = vmul.f32 %v54, %v54
    %v59 = vmul.f32 %v55, %v55
    %v60 = vmul.f32 %v56, %v56
    %v61 = vadd.f32 %v58, %v59
    %v62 = vadd.f32 %v61, %v60
    %v63 = vrot.slane %v62, 4
    %v64 = vadd.f32 %v62, %v63
    %v65 = vrot.slane %v64, 2
    %v66 = vadd.f32 %v64, %v65
    %v67 = vrot.slane %v66, 1
    %v68 = vadd.f32 %v66, %v67
    %v69 = vadd.f32 %v57, %v68
    %70 = vst [vmem:[#allocation2] sm:$0x1] %v69
    %v71 = vld [vmem:[#allocation3] sm:$0x1]
    %v72 = vand.u32 2147483647, %v54
    %v73 = vand.u32 2147483647, %v55
    %v74 = vand.u32 2147483647, %v56
    %v75 = vadd.f32 %v72, %v73
    %v76 = vadd.f32 %v75, %v74
    %v77 = vrot.slane %v76, 4
    %v78 = vadd.f32 %v76, %v77
    %v79 = vrot.slane %v78, 2
    %v80 = vadd.f32 %v78, %v79
    %v81 = vrot.slane %v80, 1
    %v82 = vadd.f32 %v80, %v81
    %v83 = vadd.f32 %v71, %v82
    %84 = vst [vmem:[#allocation3] sm:$0x1] %v83
    %v85 = vld [vmem:[#allocation5] sm:$0x1]
    %v89 = vrot.slane %v73, 7
    %vm90 = vcmask 1041409
    %v91 = vsel %vm90, %v89, %v72
    %v92 = vrot.slane %v74, 6
    %vm93 = vcmask 1042434
    %v94 = vsel %vm93, %v92, %v91
    %vm96 = vcmask 1042432
    %v97 = vsel %vm96, %v94, 0.0
    %v98 = vrot.slane %v97, 4
    %v99 = vadd.f32 %v97, %v98
    %v100 = vrot.slane %v99, 2
    %v101 = vadd.f32 %v99, %v100
    %v102 = vrot.slane %v101, 1
    %v103 = vadd.f32 %v101, %v102
    %v104 = vadd.f32 %v85, %v103
    %105 = vst [vmem:[#allocation5] sm:$0x1] %v104
    %v107 = vcombine.high %v48, %v48
    %v109 = vunpack.c.l.s4 1966171168
    %v110 = vunpack.c.0.s8 %v109
    %v111 = vlaneseq
    %v112 = vshrl.u32 %v111, 7
    %v113 = vsub.s32 %v110, %v112
    %v114 = vrot.slane %v48, %v113
    %v116 = vunpack.c.l.s4 1966171168
    %v117 = vunpack.c.0.s8 %v116
    %v118 = vlaneseq
    %v119 = vshrl.u32 %v118, 7
    %v120 = vsub.s32 %v117, %v119
    %v121 = vrot.slane %v107, %v120
    %v122 = vcombine.high %v114, %v114
    %v123 = vcombine.high %v121, %v121
    %v125 = vunpack.c.l.s4 1966171168
    %v126 = vunpack.c.0.s8 %v125
    %v127 = vlaneseq
    %v128 = vshrl.u32 %v127, 7
    %v129 = vsub.s32 %v126, %v128
    %v130 = vrot.slane %v114, %v129
    %v132 = vunpack.c.l.s4 1966171168
    %v133 = vunpack.c.0.s8 %v132
    %v134 = vlaneseq
    %v135 = vshrl.u32 %v134, 7
    %v136 = vsub.s32 %v133, %v135
    %v137 = vrot.slane %v121, %v136
    %v139 = vunpack.c.l.s4 1966171168
    %v140 = vunpack.c.0.s8 %v139
    %v141 = vlaneseq
    %v142 = vshrl.u32 %v141, 7
    %v143 = vsub.s32 %v140, %v142
    %v144 = vrot.slane %v122, %v143
    %v146 = vunpack.c.l.s4 1966171168
    %v147 = vunpack.c.0.s8 %v146
    %v148 = vlaneseq
    %v149 = vshrl.u32 %v148, 7
    %v150 = vsub.s32 %v147, %v149
    %v151 = vrot.slane %v123, %v150
    %v152 = vcombine.high %v130, %v130
    %v153 = vcombine.high %v137, %v137
    %v154 = vcombine.high %v144, %v144
    %v155 = vcombine.high %v151, %v151
    %v156 = vlaneseq
    %v157 = vshrl.u32 %v156, 7
    %v158 = vsub.s32 0, %v157
    %v159 = vrot.slane %v130, %v158
    %v160 = vlaneseq
    %v161 = vshrl.u32 %v160, 7
    %v162 = vsub.s32 0, %v161
    %v163 = vrot.slane %v144, %v162
    %v164 = vlaneseq
    %v165 = vshrl.u32 %v164, 7
    %v166 = vsub.s32 0, %v165
    %v167 = vrot.slane %v152, %v166
    %v168 = vlaneseq
    %v169 = vshrl.u32 %v168, 7
    %v170 = vsub.s32 0, %v169
    %v171 = vrot.slane %v154, %v170
    %v172 = vlaneseq
    %v173 = vshrl.u32 %v172, 7
    %v174 = vsub.s32 0, %v173
    %v175 = vrot.slane %v137, %v174
    %v176 = vlaneseq
    %v177 = vshrl.u32 %v176, 7
    %v178 = vsub.s32 0, %v177
    %v179 = vrot.slane %v151, %v178
    %v180 = vlaneseq
    %v181 = vshrl.u32 %v180, 7
    %v182 = vsub.s32 0, %v181
    %v183 = vrot.slane %v153, %v182
    %v184 = vlaneseq
    %v185 = vshrl.u32 %v184, 7
    %v186 = vsub.s32 0, %v185
    %v187 = vrot.slane %v155, %v186
    %v196 = vsub.f32 %v159, %v48
    %v197 = vsub.f32 %v163, %v48
    %v198 = vsub.f32 %v167, %v48
    %v199 = vsub.f32 %v171, %v48
    %v200 = vsub.f32 %v175, %v48
    %v201 = vsub.f32 %v179, %v48
    %v202 = vsub.f32 %v183, %v48
    %v203 = vsub.f32 %v187, %v48
    %v204 = vmul.f32 %v196, %v196
    %v205 = vmul.f32 %v197, %v197
    %v206 = vmul.f32 %v198, %v198
    %v207 = vmul.f32 %v199, %v199
    %v208 = vmul.f32 %v200, %v200
    %v209 = vmul.f32 %v201, %v201
    %v210 = vmul.f32 %v202, %v202
    %v211 = vmul.f32 %v203, %v203
    %v212 = vadd.f32 %v204, 0.0
    %v213 = vadd.f32 %v205, 0.0
    %v214 = vadd.f32 %v206, 0.0
    %v215 = vadd.f32 %v207, 0.0
    %v216 = vadd.f32 %v208, 0.0
    %v217 = vadd.f32 %v209, 0.0
    %v218 = vadd.f32 %v210, 0.0
    %v219 = vadd.f32 %v211, 0.0
    %v221 = vcombine.high %v49, %v49
    %v223 = vunpack.c.l.s4 1966171168
    %v224 = vunpack.c.0.s8 %v223
    %v225 = vlaneseq
    %v226 = vshrl.u32 %v225, 7
    %v227 = vsub.s32 %v224, %v226
    %v228 = vrot.slane %v49, %v227
    %v230 = vunpack.c.l.s4 1966171168
    %v231 = vunpack.c.0.s8 %v230
    %v232 = vlaneseq
    %v233 = vshrl.u32 %v232, 7
    %v234 = vsub.s32 %v231, %v233
    %v235 = vrot.slane %v221, %v234
    %v236 = vcombine.high %v228, %v228
    %v237 = vcombine.high %v235, %v235
    %v239 = vunpack.c.l.s4 1966171168
    %v240 = vunpack.c.0.s8 %v239
    %v241 = vlaneseq
    %v242 = vshrl.u32 %v241, 7
    %v243 = vsub.s32 %v240, %v242
    %v244 = vrot.slane %v228, %v243
    %v246 = vunpack.c.l.s4 1966171168
    %v247 = vunpack.c.0.s8 %v246
    %v248 = vlaneseq
    %v249 = vshrl.u32 %v248, 7
    %v250 = vsub.s32 %v247, %v249
    %v251 = vrot.slane %v235, %v250
    %v253 = vunpack.c.l.s4 1966171168
    %v254 = vunpack.c.0.s8 %v253
    %v255 = vlaneseq
    %v256 = vshrl.u32 %v255, 7
    %v257 = vsub.s32 %v254, %v256
    %v258 = vrot.slane %v236, %v257
    %v260 = vunpack.c.l.s4 1966171168
    %v261 = vunpack.c.0.s8 %v260
    %v262 = vlaneseq
    %v263 = vshrl.u32 %v262, 7
    %v264 = vsub.s32 %v261, %v263
    %v265 = vrot.slane %v237, %v264
    %v266 = vcombine.high %v244, %v244
    %v267 = vcombine.high %v251, %v251
    %v268 = vcombine.high %v258, %v258
    %v269 = vcombine.high %v265, %v265
    %v270 = vlaneseq
    %v271 = vshrl.u32 %v270, 7
    %v272 = vsub.s32 0, %v271
    %v273 = vrot.slane %v244, %v272
    %v274 = vlaneseq
    %v275 = vshrl.u32 %v274, 7
    %v276 = vsub.s32 0, %v275
    %v277 = vrot.slane %v258, %v276
    %v278 = vlaneseq
    %v279 = vshrl.u32 %v278, 7
    %v280 = vsub.s32 0, %v279
    %v281 = vrot.slane %v266, %v280
    %v282 = vlaneseq
    %v283 = vshrl.u32 %v282, 7
    %v284 = vsub.s32 0, %v283
    %v285 = vrot.slane %v268, %v284
    %v286 = vlaneseq
    %v287 = vshrl.u32 %v286, 7
    %v288 = vsub.s32 0, %v287
    %v289 = vrot.slane %v251, %v288
    %v290 = vlaneseq
    %v291 = vshrl.u32 %v290, 7
    %v292 = vsub.s32 0, %v291
    %v293 = vrot.slane %v265, %v292
    %v294 = vlaneseq
    %v295 = vshrl.u32 %v294, 7
    %v296 = vsub.s32 0, %v295
    %v297 = vrot.slane %v267, %v296
    %v298 = vlaneseq
    %v299 = vshrl.u32 %v298, 7
    %v300 = vsub.s32 0, %v299
    %v301 = vrot.slane %v269, %v300
    %v310 = vsub.f32 %v273, %v49
    %v311 = vsub.f32 %v277, %v49
    %v312 = vsub.f32 %v281, %v49
    %v313 = vsub.f32 %v285, %v49
    %v314 = vsub.f32 %v289, %v49
    %v315 = vsub.f32 %v293, %v49
    %v316 = vsub.f32 %v297, %v49
    %v317 = vsub.f32 %v301, %v49
    %v318 = vmul.f32 %v310, %v310
    %v319 = vmul.f32 %v311, %v311
    %v320 = vmul.f32 %v312, %v312
    %v321 = vmul.f32 %v313, %v313
    %v322 = vmul.f32 %v314, %v314
    %v323 = vmul.f32 %v315, %v315
    %v324 = vmul.f32 %v316, %v316
    %v325 = vmul.f32 %v317, %v317
    %v326 = vadd.f32 %v212, %v318
    %v327 = vadd.f32 %v213, %v319
    %v328 = vadd.f32 %v214, %v320
    %v329 = vadd.f32 %v215, %v321
    %v330 = vadd.f32 %v216, %v322
    %v331 = vadd.f32 %v217, %v323
    %v332 = vadd.f32 %v218, %v324
    %v333 = vadd.f32 %v219, %v325
    %v335 = vcombine.high %v50, %v50
    %v337 = vunpack.c.l.s4 1966171168
    %v338 = vunpack.c.0.s8 %v337
    %v339 = vlaneseq
    %v340 = vshrl.u32 %v339, 7
    %v341 = vsub.s32 %v338, %v340
    %v342 = vrot.slane %v50, %v341
    %v344 = vunpack.c.l.s4 1966171168
    %v345 = vunpack.c.0.s8 %v344
    %v346 = vlaneseq
    %v347 = vshrl.u32 %v346, 7
    %v348 = vsub.s32 %v345, %v347
    %v349 = vrot.slane %v335, %v348
    %v350 = vcombine.high %v342, %v342
    %v351 = vcombine.high %v349, %v349
    %v353 = vunpack.c.l.s4 1966171168
    %v354 = vunpack.c.0.s8 %v353
    %v355 = vlaneseq
    %v356 = vshrl.u32 %v355, 7
    %v357 = vsub.s32 %v354, %v356
    %v358 = vrot.slane %v342, %v357
    %v360 = vunpack.c.l.s4 1966171168
    %v361 = vunpack.c.0.s8 %v360
    %v362 = vlaneseq
    %v363 = vshrl.u32 %v362, 7
    %v364 = vsub.s32 %v361, %v363
    %v365 = vrot.slane %v349, %v364
    %v367 = vunpack.c.l.s4 1966171168
    %v368 = vunpack.c.0.s8 %v367
    %v369 = vlaneseq
    %v370 = vshrl.u32 %v369, 7
    %v371 = vsub.s32 %v368, %v370
    %v372 = vrot.slane %v350, %v371
    %v374 = vunpack.c.l.s4 1966171168
    %v375 = vunpack.c.0.s8 %v374
    %v376 = vlaneseq
    %v377 = vshrl.u32 %v376, 7
    %v378 = vsub.s32 %v375, %v377
    %v379 = vrot.slane %v351, %v378
    %v380 = vcombine.high %v358, %v358
    %v381 = vcombine.high %v365, %v365
    %v382 = vcombine.high %v372, %v372
    %v383 = vcombine.high %v379, %v379
    %v384 = vlaneseq
    %v385 = vshrl.u32 %v384, 7
    %v386 = vsub.s32 0, %v385
    %v387 = vrot.slane %v358, %v386
    %v388 = vlaneseq
    %v389 = vshrl.u32 %v388, 7
    %v390 = vsub.s32 0, %v389
    %v391 = vrot.slane %v372, %v390
    %v392 = vlaneseq
    %v393 = vshrl.u32 %v392, 7
    %v394 = vsub.s32 0, %v393
    %v395 = vrot.slane %v380, %v394
    %v396 = vlaneseq
    %v397 = vshrl.u32 %v396, 7
    %v398 = vsub.s32 0, %v397
    %v399 = vrot.slane %v382, %v398
    %v400 = vlaneseq
    %v401 = vshrl.u32 %v400, 7
    %v402 = vsub.s32 0, %v401
    %v403 = vrot.slane %v365, %v402
    %v404 = vlaneseq
    %v405 = vshrl.u32 %v404, 7
    %v406 = vsub.s32 0, %v405
    %v407 = vrot.slane %v379, %v406
    %v408 = vlaneseq
    %v409 = vshrl.u32 %v408, 7
    %v410 = vsub.s32 0, %v409
    %v411 = vrot.slane %v381, %v410
    %v412 = vlaneseq
    %v413 = vshrl.u32 %v412, 7
    %v414 = vsub.s32 0, %v413
    %v415 = vrot.slane %v383, %v414
    %v424 = vsub.f32 %v387, %v50
    %v425 = vsub.f32 %v391, %v50
    %v426 = vsub.f32 %v395, %v50
    %v427 = vsub.f32 %v399, %v50
    %v428 = vsub.f32 %v403, %v50
    %v429 = vsub.f32 %v407, %v50
    %v430 = vsub.f32 %v411, %v50
    %v431 = vsub.f32 %v415, %v50
    %v432 = vmul.f32 %v424, %v424
    %v433 = vmul.f32 %v425, %v425
    %v434 = vmul.f32 %v426, %v426
    %v435 = vmul.f32 %v427, %v427
    %v436 = vmul.f32 %v428, %v428
    %v437 = vmul.f32 %v429, %v429
    %v438 = vmul.f32 %v430, %v430
    %v439 = vmul.f32 %v431, %v431
    %v440 = vadd.f32 %v326, %v432
    %v441 = vadd.f32 %v327, %v433
    %v442 = vadd.f32 %v328, %v434
    %v443 = vadd.f32 %v329, %v435
    %v444 = vadd.f32 %v330, %v436
    %v445 = vadd.f32 %v331, %v437
    %v446 = vadd.f32 %v332, %v438
    %v447 = vadd.f32 %v333, %v439
    %v448 = vrsqrt.pop %v440
    %v449 = vmul.f32 %v440, %v448
    %vm450 = vcmp.eq.f32.partialorder %v440, inf
    %v451 = vsel %vm450, %v440, %v449
    %vm452 = vcmp.eq.f32.partialorder %v440, 0.0
    %v453 = vand.u32 %v440, 2147483648
    %v454 = vsel %vm452, %v453, %v451
    %v455 = vrsqrt.pop %v441
    %v456 = vmul.f32 %v441, %v455
    %vm457 = vcmp.eq.f32.partialorder %v441, inf
    %v458 = vsel %vm457, %v441, %v456
    %vm459 = vcmp.eq.f32.partialorder %v441, 0.0
    %v460 = vand.u32 %v441, 2147483648
    %v461 = vsel %vm459, %v460, %v458
    %v462 = vrsqrt.pop %v442
    %v463 = vmul.f32 %v442, %v462
    %vm464 = vcmp.eq.f32.partialorder %v442, inf
    %v465 = vsel %vm464, %v442, %v463
    %vm466 = vcmp.eq.f32.partialorder %v442, 0.0
    %v467 = vand.u32 %v442, 2147483648
    %v468 = vsel %vm466, %v467, %v465
    %v469 = vrsqrt.pop %v443
    %v470 = vmul.f32 %v443, %v469
    %vm471 = vcmp.eq.f32.partialorder %v443, inf
    %v472 = vsel %vm471, %v443, %v470
    %vm473 = vcmp.eq.f32.partialorder %v443, 0.0
    %v474 = vand.u32 %v443, 2147483648
    %v475 = vsel %vm473, %v474, %v472
    %v476 = vrsqrt.pop %v444
    %v477 = vmul.f32 %v444, %v476
    %vm478 = vcmp.eq.f32.partialorder %v444, inf
    %v479 = vsel %vm478, %v444, %v477
    %vm480 = vcmp.eq.f32.partialorder %v444, 0.0
    %v481 = vand.u32 %v444, 2147483648
    %v482 = vsel %vm480, %v481, %v479
    %v483 = vrsqrt.pop %v445
    %v484 = vmul.f32 %v445, %v483
    %vm485 = vcmp.eq.f32.partialorder %v445, inf
    %v486 = vsel %vm485, %v445, %v484
    %vm487 = vcmp.eq.f32.partialorder %v445, 0.0
    %v488 = vand.u32 %v445, 2147483648
    %v489 = vsel %vm487, %v488, %v486
    %v490 = vrsqrt.pop %v446
    %v491 = vmul.f32 %v446, %v490
    %vm492 = vcmp.eq.f32.partialorder %v446, inf
    %v493 = vsel %vm492, %v446, %v491
    %vm494 = vcmp.eq.f32.partialorder %v446, 0.0
    %v495 = vand.u32 %v446, 2147483648
    %v496 = vsel %vm494, %v495, %v493
    %v497 = vrsqrt.pop %v447
    %v498 = vmul.f32 %v447, %v497
    %vm499 = vcmp.eq.f32.partialorder %v447, inf
    %v500 = vsel %vm499, %v447, %v498
    %vm501 = vcmp.eq.f32.partialorder %v447, 0.0
    %v502 = vand.u32 %v447, 2147483648
    %v503 = vsel %vm501, %v502, %v500
    %v505 = vcombine.high %v51, %v51
    %v507 = vunpack.c.l.s4 1966171168
    %v508 = vunpack.c.0.s8 %v507
    %v509 = vlaneseq
    %v510 = vshrl.u32 %v509, 7
    %v511 = vsub.s32 %v508, %v510
    %v512 = vrot.slane %v51, %v511
    %v514 = vunpack.c.l.s4 1966171168
    %v515 = vunpack.c.0.s8 %v514
    %v516 = vlaneseq
    %v517 = vshrl.u32 %v516, 7
    %v518 = vsub.s32 %v515, %v517
    %v519 = vrot.slane %v505, %v518
    %v520 = vcombine.high %v512, %v512
    %v521 = vcombine.high %v519, %v519
    %v523 = vunpack.c.l.s4 1966171168
    %v524 = vunpack.c.0.s8 %v523
    %v525 = vlaneseq
    %v526 = vshrl.u32 %v525, 7
    %v527 = vsub.s32 %v524, %v526
    %v528 = vrot.slane %v512, %v527
    %v530 = vunpack.c.l.s4 1966171168
    %v531 = vunpack.c.0.s8 %v530
    %v532 = vlaneseq
    %v533 = vshrl.u32 %v532, 7
    %v534 = vsub.s32 %v531, %v533
    %v535 = vrot.slane %v519, %v534
    %v537 = vunpack.c.l.s4 1966171168
    %v538 = vunpack.c.0.s8 %v537
    %v539 = vlaneseq
    %v540 = vshrl.u32 %v539, 7
    %v541 = vsub.s32 %v538, %v540
    %v542 = vrot.slane %v520, %v541
    %v544 = vunpack.c.l.s4 1966171168
    %v545 = vunpack.c.0.s8 %v544
    %v546 = vlaneseq
    %v547 = vshrl.u32 %v546, 7
    %v548 = vsub.s32 %v545, %v547
    %v549 = vrot.slane %v521, %v548
    %v550 = vcombine.high %v528, %v528
    %v551 = vcombine.high %v535, %v535
    %v552 = vcombine.high %v542, %v542
    %v553 = vcombine.high %v549, %v549
    %v554 = vlaneseq
    %v555 = vshrl.u32 %v554, 7
    %v556 = vsub.s32 0, %v555
    %v557 = vrot.slane %v528, %v556
    %v558 = vlaneseq
    %v559 = vshrl.u32 %v558, 7
    %v560 = vsub.s32 0, %v559
    %v561 = vrot.slane %v542, %v560
    %v562 = vlaneseq
    %v563 = vshrl.u32 %v562, 7
    %v564 = vsub.s32 0, %v563
    %v565 = vrot.slane %v550, %v564
    %v566 = vlaneseq
    %v567 = vshrl.u32 %v566, 7
    %v568 = vsub.s32 0, %v567
    %v569 = vrot.slane %v552, %v568
    %v570 = vlaneseq
    %v571 = vshrl.u32 %v570, 7
    %v572 = vsub.s32 0, %v571
    %v573 = vrot.slane %v535, %v572
    %v574 = vlaneseq
    %v575 = vshrl.u32 %v574, 7
    %v576 = vsub.s32 0, %v575
    %v577 = vrot.slane %v549, %v576
    %v578 = vlaneseq
    %v579 = vshrl.u32 %v578, 7
    %v580 = vsub.s32 0, %v579
    %v581 = vrot.slane %v551, %v580
    %v582 = vlaneseq
    %v583 = vshrl.u32 %v582, 7
    %v584 = vsub.s32 0, %v583
    %v585 = vrot.slane %v553, %v584
    %v594 = vsub.f32 %v557, %v51
    %v595 = vsub.f32 %v561, %v51
    %v596 = vsub.f32 %v565, %v51
    %v597 = vsub.f32 %v569, %v51
    %v598 = vsub.f32 %v573, %v51
    %v599 = vsub.f32 %v577, %v51
    %v600 = vsub.f32 %v581, %v51
    %v601 = vsub.f32 %v585, %v51
    %v602 = vmul.f32 %v594, %v594
    %v603 = vmul.f32 %v595, %v595
    %v604 = vmul.f32 %v596, %v596
    %v605 = vmul.f32 %v597, %v597
    %v606 = vmul.f32 %v598, %v598
    %v607 = vmul.f32 %v599, %v599
    %v608 = vmul.f32 %v600, %v600
    %v609 = vmul.f32 %v601, %v601
    %v610 = vadd.f32 %v602, 0.0
    %v611 = vadd.f32 %v603, 0.0
    %v612 = vadd.f32 %v604, 0.0
    %v613 = vadd.f32 %v605, 0.0
    %v614 = vadd.f32 %v606, 0.0
    %v615 = vadd.f32 %v607, 0.0
    %v616 = vadd.f32 %v608, 0.0
    %v617 = vadd.f32 %v609, 0.0
    %v619 = vcombine.high %v52, %v52
    %v621 = vunpack.c.l.s4 1966171168
    %v622 = vunpack.c.0.s8 %v621
    %v623 = vlaneseq
    %v624 = vshrl.u32 %v623, 7
    %v625 = vsub.s32 %v622, %v624
    %v626 = vrot.slane %v52, %v625
    %v628 = vunpack.c.l.s4 1966171168
    %v629 = vunpack.c.0.s8 %v628
    %v630 = vlaneseq
    %v631 = vshrl.u32 %v630, 7
    %v632 = vsub.s32 %v629, %v631
    %v633 = vrot.slane %v619, %v632
    %v634 = vcombine.high %v626, %v626
    %v635 = vcombine.high %v633, %v633
    %v637 = vunpack.c.l.s4 1966171168
    %v638 = vunpack.c.0.s8 %v637
    %v639 = vlaneseq
    %v640 = vshrl.u32 %v639, 7
    %v641 = vsub.s32 %v638, %v640
    %v642 = vrot.slane %v626, %v641
    %v644 = vunpack.c.l.s4 1966171168
    %v645 = vunpack.c.0.s8 %v644
    %v646 = vlaneseq
    %v647 = vshrl.u32 %v646, 7
    %v648 = vsub.s32 %v645, %v647
    %v649 = vrot.slane %v633, %v648
    %v651 = vunpack.c.l.s4 1966171168
    %v652 = vunpack.c.0.s8 %v651
    %v653 = vlaneseq
    %v654 = vshrl.u32 %v653, 7
    %v655 = vsub.s32 %v652, %v654
    %v656 = vrot.slane %v634, %v655
    %v658 = vunpack.c.l.s4 1966171168
    %v659 = vunpack.c.0.s8 %v658
    %v660 = vlaneseq
    %v661 = vshrl.u32 %v660, 7
    %v662 = vsub.s32 %v659, %v661
    %v663 = vrot.slane %v635, %v662
    %v664 = vcombine.high %v642, %v642
    %v665 = vcombine.high %v649, %v649
    %v666 = vcombine.high %v656, %v656
    %v667 = vcombine.high %v663, %v663
    %v668 = vlaneseq
    %v669 = vshrl.u32 %v668, 7
    %v670 = vsub.s32 0, %v669
    %v671 = vrot.slane %v642, %v670
    %v672 = vlaneseq
    %v673 = vshrl.u32 %v672, 7
    %v674 = vsub.s32 0, %v673
    %v675 = vrot.slane %v656, %v674
    %v676 = vlaneseq
    %v677 = vshrl.u32 %v676, 7
    %v678 = vsub.s32 0, %v677
    %v679 = vrot.slane %v664, %v678
    %v680 = vlaneseq
    %v681 = vshrl.u32 %v680, 7
    %v682 = vsub.s32 0, %v681
    %v683 = vrot.slane %v666, %v682
    %v684 = vlaneseq
    %v685 = vshrl.u32 %v684, 7
    %v686 = vsub.s32 0, %v685
    %v687 = vrot.slane %v649, %v686
    %v688 = vlaneseq
    %v689 = vshrl.u32 %v688, 7
    %v690 = vsub.s32 0, %v689
    %v691 = vrot.slane %v663, %v690
    %v692 = vlaneseq
    %v693 = vshrl.u32 %v692, 7
    %v694 = vsub.s32 0, %v693
    %v695 = vrot.slane %v665, %v694
    %v696 = vlaneseq
    %v697 = vshrl.u32 %v696, 7
    %v698 = vsub.s32 0, %v697
    %v699 = vrot.slane %v667, %v698
    %v708 = vsub.f32 %v671, %v52
    %v709 = vsub.f32 %v675, %v52
    %v710 = vsub.f32 %v679, %v52
    %v711 = vsub.f32 %v683, %v52
    %v712 = vsub.f32 %v687, %v52
    %v713 = vsub.f32 %v691, %v52
    %v714 = vsub.f32 %v695, %v52
    %v715 = vsub.f32 %v699, %v52
    %v716 = vmul.f32 %v708, %v708
    %v717 = vmul.f32 %v709, %v709
    %v718 = vmul.f32 %v710, %v710
    %v719 = vmul.f32 %v711, %v711
    %v720 = vmul.f32 %v712, %v712
    %v721 = vmul.f32 %v713, %v713
    %v722 = vmul.f32 %v714, %v714
    %v723 = vmul.f32 %v715, %v715
    %v724 = vadd.f32 %v610, %v716
    %v725 = vadd.f32 %v611, %v717
    %v726 = vadd.f32 %v612, %v718
    %v727 = vadd.f32 %v613, %v719
    %v728 = vadd.f32 %v614, %v720
    %v729 = vadd.f32 %v615, %v721
    %v730 = vadd.f32 %v616, %v722
    %v731 = vadd.f32 %v617, %v723
    %v733 = vcombine.high %v53, %v53
    %v735 = vunpack.c.l.s4 1966171168
    %v736 = vunpack.c.0.s8 %v735
    %v737 = vlaneseq
    %v738 = vshrl.u32 %v737, 7
    %v739 = vsub.s32 %v736, %v738
    %v740 = vrot.slane %v53, %v739
    %v742 = vunpack.c.l.s4 1966171168
    %v743 = vunpack.c.0.s8 %v742
    %v744 = vlaneseq
    %v745 = vshrl.u32 %v744, 7
    %v746 = vsub.s32 %v743, %v745
    %v747 = vrot.slane %v733, %v746
    %v748 = vcombine.high %v740, %v740
    %v749 = vcombine.high %v747, %v747
    %v751 = vunpack.c.l.s4 1966171168
    %v752 = vunpack.c.0.s8 %v751
    %v753 = vlaneseq
    %v754 = vshrl.u32 %v753, 7
    %v755 = vsub.s32 %v752, %v754
    %v756 = vrot.slane %v740, %v755
    %v758 = vunpack.c.l.s4 1966171168
    %v759 = vunpack.c.0.s8 %v758
    %v760 = vlaneseq
    %v761 = vshrl.u32 %v760, 7
    %v762 = vsub.s32 %v759, %v761
    %v763 = vrot.slane %v747, %v762
    %v765 = vunpack.c.l.s4 1966171168
    %v766 = vunpack.c.0.s8 %v765
    %v767 = vlaneseq
    %v768 = vshrl.u32 %v767, 7
    %v769 = vsub.s32 %v766, %v768
    %v770 = vrot.slane %v748, %v769
    %v772 = vunpack.c.l.s4 1966171168
    %v773 = vunpack.c.0.s8 %v772
    %v774 = vlaneseq
    %v775 = vshrl.u32 %v774, 7
    %v776 = vsub.s32 %v773, %v775
    %v777 = vrot.slane %v749, %v776
    %v778 = vcombine.high %v756, %v756
    %v779 = vcombine.high %v763, %v763
    %v780 = vcombine.high %v770, %v770
    %v781 = vcombine.high %v777, %v777
    %v782 = vlaneseq
    %v783 = vshrl.u32 %v782, 7
    %v784 = vsub.s32 0, %v783
    %v785 = vrot.slane %v756, %v784
    %v786 = vlaneseq
    %v787 = vshrl.u32 %v786, 7
    %v788 = vsub.s32 0, %v787
    %v789 = vrot.slane %v770, %v788
    %v790 = vlaneseq
    %v791 = vshrl.u32 %v790, 7
    %v792 = vsub.s32 0, %v791
    %v793 = vrot.slane %v778, %v792
    %v794 = vlaneseq
    %v795 = vshrl.u32 %v794, 7
    %v796 = vsub.s32 0, %v795
    %v797 = vrot.slane %v780, %v796
    %v798 = vlaneseq
    %v799 = vshrl.u32 %v798, 7
    %v800 = vsub.s32 0, %v799
    %v801 = vrot.slane %v763, %v800
    %v802 = vlaneseq
    %v803 = vshrl.u32 %v802, 7
    %v804 = vsub.s32 0, %v803
    %v805 = vrot.slane %v777, %v804
    %v806 = vlaneseq
    %v807 = vshrl.u32 %v806, 7
    %v808 = vsub.s32 0, %v807
    %v809 = vrot.slane %v779, %v808
    %v810 = vlaneseq
    %v811 = vshrl.u32 %v810, 7
    %v812 = vsub.s32 0, %v811
    %v813 = vrot.slane %v781, %v812
    %v822 = vsub.f32 %v785, %v53
    %v823 = vsub.f32 %v789, %v53
    %v824 = vsub.f32 %v793, %v53
    %v825 = vsub.f32 %v797, %v53
    %v826 = vsub.f32 %v801, %v53
    %v827 = vsub.f32 %v805, %v53
    %v828 = vsub.f32 %v809, %v53
    %v829 = vsub.f32 %v813, %v53
    %v830 = vmul.f32 %v822, %v822
    %v831 = vmul.f32 %v823, %v823
    %v832 = vmul.f32 %v824, %v824
    %v833 = vmul.f32 %v825, %v825
    %v834 = vmul.f32 %v826, %v826
    %v835 = vmul.f32 %v827, %v827
    %v836 = vmul.f32 %v828, %v828
    %v837 = vmul.f32 %v829, %v829
    %v838 = vadd.f32 %v724, %v830
    %v839 = vadd.f32 %v725, %v831
    %v840 = vadd.f32 %v726, %v832
    %v841 = vadd.f32 %v727, %v833
    %v842 = vadd.f32 %v728, %v834
    %v843 = vadd.f32 %v729, %v835
    %v844 = vadd.f32 %v730, %v836
    %v845 = vadd.f32 %v731, %v837
    %v846 = vrsqrt.pop %v838
    %v847 = vmul.f32 %v838, %v846
    %vm848 = vcmp.eq.f32.partialorder %v838, inf
    %v849 = vsel %vm848, %v838, %v847
    %vm850 = vcmp.eq.f32.partialorder %v838, 0.0
    %v851 = vand.u32 %v838, 2147483648
    %v852 = vsel %vm850, %v851, %v849
    %v853 = vrsqrt.pop %v839
    %v854 = vmul.f32 %v839, %v853
    %vm855 = vcmp.eq.f32.partialorder %v839, inf
    %v856 = vsel %vm855, %v839, %v854
    %vm857 = vcmp.eq.f32.partialorder %v839, 0.0
    %v858 = vand.u32 %v839, 2147483648
    %v859 = vsel %vm857, %v858, %v856
    %v860 = vrsqrt.pop %v840
    %v861 = vmul.f32 %v840, %v860
    %vm862 = vcmp.eq.f32.partialorder %v840, inf
    %v863 = vsel %vm862, %v840, %v861
    %vm864 = vcmp.eq.f32.partialorder %v840, 0.0
    %v865 = vand.u32 %v840, 2147483648
    %v866 = vsel %vm864, %v865, %v863
    %v867 = vrsqrt.pop %v841
    %v868 = vmul.f32 %v841, %v867
    %vm869 = vcmp.eq.f32.partialorder %v841, inf
    %v870 = vsel %vm869, %v841, %v868
    %vm871 = vcmp.eq.f32.partialorder %v841, 0.0
    %v872 = vand.u32 %v841, 2147483648
    %v873 = vsel %vm871, %v872, %v870
    %v874 = vrsqrt.pop %v842
    %v875 = vmul.f32 %v842, %v874
    %vm876 = vcmp.eq.f32.partialorder %v842, inf
    %v877 = vsel %vm876, %v842, %v875
    %vm878 = vcmp.eq.f32.partialorder %v842, 0.0
    %v879 = vand.u32 %v842, 2147483648
    %v880 = vsel %vm878, %v879, %v877
    %v881 = vrsqrt.pop %v843
    %v882 = vmul.f32 %v843, %v881
    %vm883 = vcmp.eq.f32.partialorder %v843, inf
    %v884 = vsel %vm883, %v843, %v882
    %vm885 = vcmp.eq.f32.partialorder %v843, 0.0
    %v886 = vand.u32 %v843, 2147483648
    %v887 = vsel %vm885, %v886, %v884
    %v888 = vrsqrt.pop %v844
    %v889 = vmul.f32 %v844, %v888
    %vm890 = vcmp.eq.f32.partialorder %v844, inf
    %v891 = vsel %vm890, %v844, %v889
    %vm892 = vcmp.eq.f32.partialorder %v844, 0.0
    %v893 = vand.u32 %v844, 2147483648
    %v894 = vsel %vm892, %v893, %v891
    %v895 = vrsqrt.pop %v845
    %v896 = vmul.f32 %v845, %v895
    %vm897 = vcmp.eq.f32.partialorder %v845, inf
    %v898 = vsel %vm897, %v845, %v896
    %vm899 = vcmp.eq.f32.partialorder %v845, 0.0
    %v900 = vand.u32 %v845, 2147483648
    %v901 = vsel %vm899, %v900, %v898
    %v902 = vld [vmem:[#allocation4] sm:$0x1]
    %v903 = vsub.f32 %v454, %v852
    %v904 = vsub.f32 %v461, %v859
    %v905 = vsub.f32 %v468, %v866
    %v906 = vsub.f32 %v475, %v873
    %v907 = vsub.f32 %v482, %v880
    %v908 = vsub.f32 %v489, %v887
    %v909 = vsub.f32 %v496, %v894
    %v910 = vsub.f32 %v503, %v901
    %v911 = vand.u32 2147483647, %v903
    %v912 = vand.u32 2147483647, %v904
    %v913 = vand.u32 2147483647, %v905
    %v914 = vand.u32 2147483647, %v906
    %v915 = vand.u32 2147483647, %v907
    %v916 = vand.u32 2147483647, %v908
    %v917 = vand.u32 2147483647, %v909
    %v918 = vand.u32 2147483647, %v910
    %v919 = vadd.f32 %v911, %v912
    %v920 = vadd.f32 %v919, %v913
    %v921 = vadd.f32 %v920, %v914
    %v922 = vadd.f32 %v921, %v915
    %v923 = vadd.f32 %v922, %v916
    %v924 = vadd.f32 %v923, %v917
    %v925 = vadd.f32 %v924, %v918
    %v926 = vrot.slane %v925, 4
    %v927 = vadd.f32 %v925, %v926
    %v928 = vrot.slane %v927, 2
    %v929 = vadd.f32 %v927, %v928
    %v930 = vrot.slane %v929, 1
    %v931 = vadd.f32 %v929, %v930
    %v932 = vmul.f32 %v931, 0.5
    %v933 = vadd.f32 %v902, %v932
    %934 = vst [vmem:[#allocation4] sm:$0x1] %v933
    // Predicated region
    $region22: #{tpu_custom_call.1} parent=1 // pred_check
      %p935 = pneg %p40
    $region23: #{tpu_custom_call.1} parent=1 // pred_check_branch
      %937 = sbr.rel (%p935) target = $region25
    $region24: #{tpu_custom_call.1} parent=1 // pred_region
      %v938 = vld [vmem:[#allocation2] sm:$0x1]
      %vm939 = vcmask 1040384
      %v940 = vsel %vm939, %v938, 0.0
      %941 = vadd.xlane.f32.xlu0 %v940
      %v942 = vpop.xlane.xlu0 %941
      %v943 = vrot.slane %v942, 4
      %v944 = vadd.f32 %v942, %v943
      %v945 = vrot.slane %v944, 2
      %v946 = vadd.f32 %v944, %v945
      %v947 = vrot.slane %v946, 1
      %v948 = vadd.f32 %v946, %v947
      %s949 = vtos %v948
      %s950 = smul.f32 %s949, 0.020833334
      %v951 = vld [vmem:[#allocation3] sm:$0x1]
      %v952 = vsel %vm939, %v951, 0.0
      %953 = vadd.xlane.f32.xlu0 %v952
      %v954 = vpop.xlane.xlu0 %953
      %v955 = vrot.slane %v954, 4
      %v956 = vadd.f32 %v954, %v955
      %v957 = vrot.slane %v956, 2
      %v958 = vadd.f32 %v956, %v957
      %v959 = vrot.slane %v958, 1
      %v960 = vadd.f32 %v958, %v959
      %s961 = vtos %v960
      %s962 = smul.f32 %s961, 0.020833334
      %v963 = vld [vmem:[#allocation4] sm:$0x1]
      %v964 = vsel %vm939, %v963, 0.0
      %965 = vadd.xlane.f32.xlu0 %v964
      %v966 = vpop.xlane.xlu0 %965
      %v967 = vrot.slane %v966, 4
      %v968 = vadd.f32 %v966, %v967
      %v969 = vrot.slane %v968, 2
      %v970 = vadd.f32 %v968, %v969
      %v971 = vrot.slane %v970, 1
      %v972 = vadd.f32 %v970, %v971
      %s973 = vtos %v972
      %s974 = smul.f32 %s973, 0.017857144
      %v975 = vld [vmem:[#allocation5] sm:$0x1]
      %v976 = vsel %vm939, %v975, 0.0
      %977 = vadd.xlane.f32.xlu0 %v976
      %v978 = vpop.xlane.xlu0 %977
      %v979 = vrot.slane %v978, 4
      %v980 = vadd.f32 %v978, %v979
      %v981 = vrot.slane %v980, 2
      %v982 = vadd.f32 %v980, %v981
      %v983 = vrot.slane %v982, 1
      %v984 = vadd.f32 %v982, %v983
      %s985 = vtos %v984
      %s986 = smul.f32 %s985, 0.16666667
      %s987 = sadd.f32 %s950, %s962
      %s988 = smul.f32 %s974, 0.5
      %s989 = sadd.f32 %s987, %s988
      %s990 = smul.f32 %s986, 0.25
      %s991 = sadd.f32 %s989, %s990
      %s992 = scalar_lea.smem [#allocation11], 0
      %993 = sst [smem:[%s992]] %s991
      %s994 = scalar_lea.smem [#allocation11], 1
      %995 = sst [smem:[%s994]] %s950
      %s996 = scalar_lea.smem [#allocation11], 2
      %997 = sst [smem:[%s996]] %s962
      %s998 = scalar_lea.smem [#allocation11], 3
      %999 = sst [smem:[%s998]] %s974
      %s1000 = scalar_lea.smem [#allocation11], 4
      %1001 = sst [smem:[%s1000]] %s986
      %s1002 = scalar_lea.smem [#allocation11], 5
      %1003 = sst [smem:[%s1002]] 0.0
      %s1004 = scalar_lea.smem [#allocation11], 6
      %1005 = sst [smem:[%s1004]] 0.0
      %s1006 = scalar_lea.smem [#allocation11], 7
      %1007 = sst [smem:[%s1006]] 0.0
    $region25: #{tpu_custom_call.1} parent=1 // pred_fallthru
      _
    // Predicated region
    $region26: #{tpu_custom_call.1} parent=1 // pred_check
      _
    $region27: #{tpu_custom_call.1} parent=1 // pred_check_branch
      %1009 = sbr.rel (0) target = $region29
    $region28: #{tpu_custom_call.1} parent=1 // pred_region
      %s1011 = ssub.s32 16, 16
      %1012 = vsyncadd [#allocation8], %s1011
      %1015 = dma.smem_to_hbm [#allocation11], 16, %s2, [#allocation8]
    $region29: #{tpu_custom_call.1} parent=1 // pred_fallthru
      _
    // Predicated region
    $region30: #{tpu_custom_call.1} parent=1 // pred_check
      _
    $region31: #{tpu_custom_call.1} parent=1 // pred_check_branch
      %1017 = sbr.rel (0) target = $region33
    $region32: #{tpu_custom_call.1} parent=1 // pred_region
      %1018 = dma.done [#allocation8], 16
    $region33: #{tpu_custom_call.1} parent=1 // pred_fallthru
      _
    %1019 = sfence
    %1020 = vsyncpa [#allocation7], 1
    %1021 = vsyncpa [#allocation10], 1
    %1022 = vsyncpa [#allocation8], 1

</llo_original>
